<compile_context>
chip_gen: v7x
topology: tpu7x:2x2x1
jax: 0.10.0
libtpu: 0.0.40
codegen_flags: <defaults>
</compile_context>

<pallas_src>
import jax
import jax.numpy as jnp
from jax.experimental import pallas as pl
from jax.experimental.pallas import tpu as pltpu


# ----------------------------------------------------------------------------
# Small helpers.
# ----------------------------------------------------------------------------
def _round_up(x, m):
    return (x + m - 1) // m * m


_VMEM_LIMIT_CACHE = None


def _vmem_limit():
    """~75% of per-core VMEM (48 MiB on v7x, 96 MiB on v5e/v6e)."""
    global _VMEM_LIMIT_CACHE
    if _VMEM_LIMIT_CACHE is None:
        try:
            cap = int(pltpu.get_tpu_info().vmem_capacity_bytes)
        except Exception:            # info unavailable -> assume smallest (v7x)
            cap = 64 * 1024 * 1024
        _VMEM_LIMIT_CACHE = max(32 * 1024 * 1024,
                                min(96 * 1024 * 1024, (cap * 3) // 4))
    return _VMEM_LIMIT_CACHE


def _linear_tiles(m):
    """(token tile, padded M) for the projection kernels."""
    mp = _round_up(m, 8)
    for t in (512, 256, 128):
        if mp % t == 0:
            return t, mp
    if mp > 256:                     # ragged & large: pad to a 256 multiple
        return 256, _round_up(mp, 256)
    return mp, mp                    # small: single block (mp is 8-aligned)


def _attn_tiles(n):
    """(sequence tile, padded N) for the flash-attention kernel."""
    np_ = _round_up(n, 8)
    for t in (256, 128):             # 256 fills the 256-wide MXU on v6e/v7x
        if np_ % t == 0:
            return t, np_
    if np_ > 256:
        return 128, _round_up(np_, 128)
    return np_, np_


# ----------------------------------------------------------------------------
# Fused multi-output linear: one pass over the activation, resident weights.
# ----------------------------------------------------------------------------
def _fused_linear(x2d, weights, *, biases=None, scales=None, out_dtype=None):
    """y_i = (x2d @ W_i) * s_i (+ b_i) for all i, in a single pallas_call.

    x2d: [M, K]; weights: tuple of [K, N_i]; biases: None or tuple of [1, N_i]
    (kept in f32); scales: None or tuple of (float | None).
    Returns a tuple of [M, N_i] arrays.
    """
    m, k = x2d.shape
    n_out = len(weights)
    out_dtype = x2d.dtype if out_dtype is None else out_dtype
    ns = [w.shape[1] for w in weights]
    has_bias = biases is not None

    tm, mp = _linear_tiles(m)
    if mp != m:
        x2d = jnp.pad(x2d, ((0, mp - m), (0, 0)))
    grid = (mp // tm,)

    def kernel(*refs):
        x_ref = refs[0]
        w_refs = refs[1:1 + n_out]
        off = 1 + n_out
        b_refs = refs[off:off + n_out] if has_bias else ()
        o_refs = refs[off + n_out:] if has_bias else refs[off:]
        x = x_ref[...]
        for i in range(n_out):
            y = jnp.dot(x, w_refs[i][...], preferred_element_type=jnp.float32)
            if scales is not None and scales[i] is not None:
                y = y * scales[i]                    # fused scale (f32)
            if has_bias:
                y = y + b_refs[i][...].astype(jnp.float32)   # fused bias (f32)
            o_refs[i][...] = y.astype(o_refs[i].dtype)

    def resident_spec(shape, single_buffer):
        # Constant index_map => block never changes; single-buffer it to halve
        # its VMEM footprint (default pipelining would double-buffer it).
        if single_buffer:
            try:
                return pl.BlockSpec(shape, lambda i: (0, 0),
                                    pipeline_mode=pl.Buffered(1))
            except (TypeError, AttributeError):
                pass
        return pl.BlockSpec(shape, lambda i: (0, 0))

    itemsize = jnp.dtype(x2d.dtype).itemsize
    cost = pl.CostEstimate(
        flops=int(2 * mp * k * sum(ns)),
        transcendentals=0,
        bytes_accessed=int(mp * k * itemsize
                           + sum(k * ni * jnp.dtype(w.dtype).itemsize
                                 for ni, w in zip(ns, weights))
                           + mp * sum(ns) * jnp.dtype(out_dtype).itemsize),
    )

    args = [x2d, *weights]
    if has_bias:
        args += list(biases)

    def build_and_call(single_buffer):
        in_specs = [pl.BlockSpec((tm, k), lambda i: (i, 0))]
        in_specs += [resident_spec((k, ni), single_buffer) for ni in ns]
        if has_bias:
            in_specs += [resident_spec((1, ni), single_buffer) for ni in ns]
        return pl.pallas_call(
            kernel,
            grid=grid,
            in_specs=in_specs,
            out_specs=[pl.BlockSpec((tm, ni), lambda i: (i, 0)) for ni in ns],
            out_shape=[jax.ShapeDtypeStruct((mp, ni), out_dtype) for ni in ns],
            compiler_params=pltpu.CompilerParams(
                dimension_semantics=("parallel",),
                vmem_limit_bytes=_vmem_limit()),
            cost_estimate=cost,
        )(*args)

    try:
        outs = build_and_call(True)
    except Exception:
        # pl.Buffered(1) not supported on this jax/libtpu -> default buffering.
        outs = build_and_call(False)

    if not isinstance(outs, (list, tuple)):
        outs = (outs,)
    if mp != m:
        outs = [o[:m] for o in outs]
    return tuple(outs)


# ----------------------------------------------------------------------------
# Flash-attention forward: heads handled inside the kernel (no JAX transposes),
# online softmax, kv axis is the "arbitrary" reduction axis.
# ----------------------------------------------------------------------------
def _make_flash_kernel(heads, dim_head, tk, nk_valid, need_mask):
    neg_big = float(jnp.finfo(jnp.float32).min)

    def kernel(q_ref, k_ref, v_ref, o_ref, m_sc, l_sc, acc_sc):
        ki = pl.program_id(2)

        @pl.when(ki == 0)
        def _():
            m_sc[...] = jnp.full_like(m_sc, -jnp.inf)
            l_sc[...] = jnp.zeros_like(l_sc)
            acc_sc[...] = jnp.zeros_like(acc_sc)

        kv_mask = None
        if need_mask:      # static: only emitted when Nk was padded
            key_idx = ki * tk + jax.lax.broadcasted_iota(jnp.int32, (1, tk), 1)
            kv_mask = key_idx < nk_valid            # (1, TK), broadcasts over TQ

        # Static per-head loop.  q was pre-scaled by dim_head**-0.5 in its
        # projection, so the score matmul needs no extra VPU multiply here.
        for h in range(heads):
            hs = h * dim_head
            q_h = q_ref[:, hs:hs + dim_head]        # (TQ, D)
            k_h = k_ref[:, hs:hs + dim_head]        # (TK, D)
            v_h = v_ref[:, hs:hs + dim_head]        # (TK, D)
            s = jax.lax.dot_general(                # (TQ, TK) = q_h @ k_h^T
                q_h, k_h, (((1,), (1,)), ((), ())),
                preferred_element_type=jnp.float32)
            if kv_mask is not None:
                s = jnp.where(kv_mask, s, neg_big)  # mask padded keys
            m_prev = m_sc[h]                        # (TQ, 1)
            m_new = jnp.maximum(m_prev, s.max(axis=-1, keepdims=True))
            alpha = jnp.exp(m_prev - m_new)
            p = jnp.exp(s - m_new)
            l_sc[h] = alpha * l_sc[h] + p.sum(axis=-1, keepdims=True)
            acc_sc[h] = alpha * acc_sc[h] + jax.lax.dot_general(
                p.astype(v_h.dtype), v_h, (((1,), (0,)), ((), ())),
                preferred_element_type=jnp.float32)
            m_sc[h] = m_new

        @pl.when(ki == pl.num_programs(2) - 1)
        def _():
            for h in range(heads):
                hs = h * dim_head
                inv_l = pl.reciprocal(l_sc[h], approx=True)   # EUP, ~free
                o_ref[:, hs:hs + dim_head] = (acc_sc[h] * inv_l).astype(o_ref.dtype)

    return kernel


def _flash_attention(q3, k3, v3, *, heads, dim_head):
    """q3: [B, Nq, H*D] (pre-scaled); k3, v3: [B, Nk, H*D] -> [B, Nq, H*D]."""
    b, nq, inner = q3.shape
    nk = k3.shape[1]
    tq, nq_p = _attn_tiles(nq)
    tk, nk_p = _attn_tiles(nk)
    if nq_p != nq:
        q3 = jnp.pad(q3, ((0, 0), (0, nq_p - nq), (0, 0)))
    if nk_p != nk:
        k3 = jnp.pad(k3, ((0, 0), (0, nk_p - nk), (0, 0)))
        v3 = jnp.pad(v3, ((0, 0), (0, nk_p - nk), (0, 0)))
    grid = (b, nq_p // tq, nk_p // tk)

    kernel = _make_flash_kernel(heads, dim_head, tk, nk, nk_p != nk)

    itemsize = jnp.dtype(q3.dtype).itemsize
    cost = pl.CostEstimate(
        flops=int(4 * b * heads * nq_p * nk_p * dim_head),
        transcendentals=int(b * heads * nq_p * nk_p),
        bytes_accessed=int(b * (2 * nq_p * inner
                                + 2 * (nq_p // tq) * nk_p * inner) * itemsize),
    )

    out = pl.pallas_call(
        kernel,
        grid=grid,
        in_specs=[
            pl.BlockSpec((None, tq, inner), lambda bi, qi, ki: (bi, qi, 0)),
            pl.BlockSpec((None, tk, inner), lambda bi, qi, ki: (bi, ki, 0)),
            pl.BlockSpec((None, tk, inner), lambda bi, qi, ki: (bi, ki, 0)),
        ],
        out_specs=pl.BlockSpec((None, tq, inner), lambda bi, qi, ki: (bi, qi, 0)),
        out_shape=jax.ShapeDtypeStruct((b, nq_p, inner), q3.dtype),
        scratch_shapes=[
            pltpu.VMEM((heads, tq, 1), jnp.float32),          # running max
            pltpu.VMEM((heads, tq, 1), jnp.float32),          # running denom
            pltpu.VMEM((heads, tq, dim_head), jnp.float32),   # output accumulator
        ],
        compiler_params=pltpu.CompilerParams(
            dimension_semantics=("parallel", "parallel", "arbitrary"),
            vmem_limit_bytes=_vmem_limit()),
        cost_estimate=cost,
    )(q3, k3, v3)
    if nq_p != nq:
        out = out[:, :nq]
    return out


# ----------------------------------------------------------------------------
# Full CrossAttention forward.
# ----------------------------------------------------------------------------
def cross_attention(x, wq, wk, wv, wo, bo, *, heads, dim_head,
                    context=None, matmul_dtype=jnp.bfloat16):
    """x: [B, Nq, query_dim]; context: [B, Nk, context_dim] or None (self-attn).

    Weights (transposed vs PyTorch): wq [query_dim, inner], wk/wv
    [context_dim, inner], wo [inner, query_dim], bo [1, query_dim].
    matmul_dtype casts matmul operands only (accumulation, bias add, softmax
    and the online-softmax rescale stay f32); bf16 by default (the v7x MXU has
    no native f32 path).  Pass jnp.float32 for full-precision operands.
    """
    out_dtype = x.dtype
    cdt = out_dtype if matmul_dtype is None else matmul_dtype
    ctx = x if context is None else context

    b, nq, _ = x.shape
    nk = ctx.shape[1]
    inner = heads * dim_head
    query_dim = wo.shape[1]
    scale = float(dim_head) ** -0.5

    xc = x.astype(cdt).reshape(b * nq, -1)
    wq_, wk_, wv_, wo_ = (w.astype(cdt) for w in (wq, wk, wv, wo))

    # Fused projections: each activation tensor is streamed from HBM once;
    # the softmax scale is folded into the q projection.
    if context is None:
        q2, k2, v2 = _fused_linear(xc, (wq_, wk_, wv_),
                                   scales=(scale, None, None), out_dtype=cdt)
    else:
        cc = ctx.astype(cdt).reshape(b * nk, -1)
        (q2,) = _fused_linear(xc, (wq_,), scales=(scale,), out_dtype=cdt)
        k2, v2 = _fused_linear(cc, (wk_, wv_), out_dtype=cdt)

    # Head split/merge is done inside the flash kernel; these reshapes are
    # contiguous (no transpose, no extra HBM pass).
    o3 = _flash_attention(q2.reshape(b, nq, inner),
                          k2.reshape(b, nk, inner),
                          v2.reshape(b, nk, inner),
                          heads=heads, dim_head=dim_head)

    # to_out: Linear(inner, query_dim) + Dropout(0.0) -> identity.
    (y2,) = _fused_linear(o3.reshape(b * nq, inner), (wo_,),
                          biases=(bo.astype(jnp.float32),), out_dtype=out_dtype)
    return y2.reshape(b, nq, query_dim)


# ----------------------------------------------------------------------------
# Pure-JAX reference.
# ----------------------------------------------------------------------------
def _ref_cross_attention(x, wq, wk, wv, wo, bo, *, heads, dim_head, context=None):
    ctx = x if context is None else context
    B, Nq, _ = x.shape
    Nk = ctx.shape[1]
    scale = float(dim_head) ** -0.5
    q = x @ wq
    k = ctx @ wk
    v = ctx @ wv

    def split(t, n):
        return t.reshape(B, n, heads, dim_head).transpose(0, 2, 1, 3)

    qh, kh, vh = split(q, Nq), split(k, Nk), split(v, Nk)
    sim = jnp.einsum('bhid,bhjd->bhij', qh, kh) * scale
    attn = jax.nn.softmax(sim, axis=-1)
    out = jnp.einsum('bhij,bhjd->bhid', attn, vh)
    out = out.transpose(0, 2, 1, 3).reshape(B, Nq, heads * dim_head)
    return out @ wo + bo[0]


if __name__ == "__main__":
    # CrossAttention(query_dim=32, context_dim=32, heads=4, dim_head=8)
    B, Nq, query_dim = 2, 8, 32
    heads, dim_head = 4, 8
    inner = heads * dim_head            # 32
    Nk = 16
    context_dim = query_dim

    key = jax.random.PRNGKey(0)
    kx, kc, kq, kk, kvw, ko, kb, kx2, kc2 = jax.random.split(key, 9)

    def uinit(k, shape, fan_in):
        bound = 1.0 / (fan_in ** 0.5)
        return jax.random.uniform(k, shape, minval=-bound, maxval=bound,
                                  dtype=jnp.float32)

    x = jax.random.normal(kx, (B, Nq, query_dim), dtype=jnp.float32)
    context = jax.random.normal(kc, (B, Nk, context_dim), dtype=jnp.float32)

    wq = uinit(kq, (query_dim, inner), query_dim)
    wk = uinit(kk, (context_dim, inner), context_dim)
    wv = uinit(kvw, (context_dim, inner), context_dim)
    wo = uinit(ko, (inner, query_dim), inner)
    bo = uinit(kb, (1, query_dim), inner)

    def check(out, ref, tol, tag):
        assert out.shape == ref.shape, (tag, out.shape, ref.shape)
        err = float(jnp.max(jnp.abs(out - ref)))
        assert jnp.allclose(out, ref, atol=tol, rtol=tol), (tag, err)

    # 1) Self-attention (context=None), f32 matmul operands.
    out = cross_attention(x, wq, wk, wv, wo, bo, heads=heads,
                          dim_head=dim_head, matmul_dtype=jnp.float32)
    jax.block_until_ready(out)
    ref = _ref_cross_attention(x, wq, wk, wv, wo, bo,
                               heads=heads, dim_head=dim_head)
    check(out, ref, 5e-3, "self/f32")

    # 2) Cross-attention with explicit context, f32 matmul operands.
    out = cross_attention(x, wq, wk, wv, wo, bo, heads=heads,
                          dim_head=dim_head, context=context,
                          matmul_dtype=jnp.float32)
    jax.block_until_ready(out)
    ref = _ref_cross_attention(x, wq, wk, wv, wo, bo, heads=heads,
                               dim_head=dim_head, context=context)
    check(out, ref, 5e-3, "cross/f32")

    # 3) Default path: bf16 matmul operands / f32 accumulation.
    out = cross_attention(x, wq, wk, wv, wo, bo, heads=heads,
                          dim_head=dim_head, context=context)
    jax.block_until_ready(out)
    check(out, ref, 3e-2, "cross/bf16")

    # 4) Ragged shapes (Nq=5, Nk=13): exercises token padding + key masking.
    x_r = jax.random.normal(kx2, (B, 5, query_dim), dtype=jnp.float32)
    ctx_r = jax.random.normal(kc2, (B, 13, context_dim), dtype=jnp.float32)
    out = cross_attention(x_r, wq, wk, wv, wo, bo, heads=heads,
                          dim_head=dim_head, context=ctx_r,
                          matmul_dtype=jnp.float32)
    jax.block_until_ready(out)
    ref = _ref_cross_attention(x_r, wq, wk, wv, wo, bo, heads=heads,
                               dim_head=dim_head, context=ctx_r)
    check(out, ref, 5e-3, "ragged/f32")

    print("KERNEL_OK")
</pallas_src>

<mosaic_0001>
module attributes {stable_mosaic.version = 11 : i64} {
  func.func @kernel(%arg0: i32, %arg1: memref<16x32xf32, #tpu.memory_space<vmem>>, %arg2: memref<32x32xf32, #tpu.memory_space<vmem>>, %arg3: memref<32x32xf32, #tpu.memory_space<vmem>>, %arg4: memref<32x32xf32, #tpu.memory_space<vmem>>, %arg5: memref<16x32xf32, #tpu.memory_space<vmem>>, %arg6: memref<16x32xf32, #tpu.memory_space<vmem>>, %arg7: memref<16x32xf32, #tpu.memory_space<vmem>>) attributes {dimension_semantics = [#tpu.dimension_semantics<parallel>], iteration_bounds = array<i64: 1>, scalar_prefetch = 0 : i64, scratch_operands = 0 : i64, tpu.core_type = #tpu.core_type<tc>, window_params = [{transform_indices = @transform_0, window_bounds = array<i64: 16, 32>}, {pipeline_mode = #tpu.pipeline_mode<synchronous>, transform_indices = @transform_1, window_bounds = array<i64: 32, 32>}, {pipeline_mode = #tpu.pipeline_mode<synchronous>, transform_indices = @transform_2, window_bounds = array<i64: 32, 32>}, {pipeline_mode = #tpu.pipeline_mode<synchronous>, transform_indices = @transform_3, window_bounds = array<i64: 32, 32>}, {transform_indices = @transform_4, window_bounds = array<i64: 16, 32>}, {transform_indices = @transform_5, window_bounds = array<i64: 16, 32>}, {transform_indices = @transform_6, window_bounds = array<i64: 16, 32>}]} {
    %c0 = arith.constant 0 : index
    %c0_0 = arith.constant 0 : index
    %0 = vector.load %arg1[%c0, %c0_0] : memref<16x32xf32, #tpu.memory_space<vmem>>, vector<16x32xf32>
    %c0_1 = arith.constant 0 : index
    %c0_2 = arith.constant 0 : index
    %1 = vector.load %arg2[%c0_1, %c0_2] : memref<32x32xf32, #tpu.memory_space<vmem>>, vector<32x32xf32>
    %cst = arith.constant dense<0.000000e+00> : vector<16x32xf32>
    %2 = tpu.matmul %0, %1, %cst {dimension_numbers = #tpu.dot_dimension_numbers<[1], [0], [0], [1], [0, 0, 1, 1], [], []>} : vector<16x32xf32>, vector<32x32xf32>, vector<16x32xf32> -> vector<16x32xf32>
    %cst_3 = arith.constant 0.353553385 : f32
    %3 = vector.broadcast %cst_3 : f32 to vector<16x32xf32>
    %4 = arith.mulf %2, %3 : vector<16x32xf32>
    %c0_4 = arith.constant 0 : index
    %c0_5 = arith.constant 0 : index
    %5 = vector.load %arg5[%c0_4, %c0_5] : memref<16x32xf32, #tpu.memory_space<vmem>>, vector<16x32xf32>
    tpu.vector_store %arg5[%c0_4, %c0_5], %4 {strides = array<i32>} : memref<16x32xf32, #tpu.memory_space<vmem>>, vector<16x32xf32>,
    %c0_6 = arith.constant 0 : index
    %c0_7 = arith.constant 0 : index
    %6 = vector.load %arg3[%c0_6, %c0_7] : memref<32x32xf32, #tpu.memory_space<vmem>>, vector<32x32xf32>
    %cst_8 = arith.constant dense<0.000000e+00> : vector<16x32xf32>
    %7 = tpu.matmul %0, %6, %cst_8 {dimension_numbers = #tpu.dot_dimension_numbers<[1], [0], [0], [1], [0, 0, 1, 1], [], []>} : vector<16x32xf32>, vector<32x32xf32>, vector<16x32xf32> -> vector<16x32xf32>
    %c0_9 = arith.constant 0 : index
    %c0_10 = arith.constant 0 : index
    %8 = vector.load %arg6[%c0_9, %c0_10] : memref<16x32xf32, #tpu.memory_space<vmem>>, vector<16x32xf32>
    tpu.vector_store %arg6[%c0_9, %c0_10], %7 {strides = array<i32>} : memref<16x32xf32, #tpu.memory_space<vmem>>, vector<16x32xf32>,
    %c0_11 = arith.constant 0 : index
    %c0_12 = arith.constant 0 : index
    %9 = vector.load %arg4[%c0_11, %c0_12] : memref<32x32xf32, #tpu.memory_space<vmem>>, vector<32x32xf32>
    %cst_13 = arith.constant dense<0.000000e+00> : vector<16x32xf32>
    %10 = tpu.matmul %0, %9, %cst_13 {dimension_numbers = #tpu.dot_dimension_numbers<[1], [0], [0], [1], [0, 0, 1, 1], [], []>} : vector<16x32xf32>, vector<32x32xf32>, vector<16x32xf32> -> vector<16x32xf32>
    %c0_14 = arith.constant 0 : index
    %c0_15 = arith.constant 0 : index
    %11 = vector.load %arg7[%c0_14, %c0_15] : memref<16x32xf32, #tpu.memory_space<vmem>>, vector<16x32xf32>
    tpu.vector_store %arg7[%c0_14, %c0_15], %10 {strides = array<i32>} : memref<16x32xf32, #tpu.memory_space<vmem>>, vector<16x32xf32>,
    return
  }
  func.func @transform_0(%arg0: i32) -> (i32, i32) {
    %c0_i32 = arith.constant 0 : i32
    %c0_i32_0 = arith.constant 0 : i32
    return %arg0, %c0_i32 : i32, i32
  }
  func.func @transform_1(%arg0: i32) -> (i32, i32) {
    %c0_i32 = arith.constant 0 : i32
    %c0_i32_0 = arith.constant 0 : i32
    %c0_i32_1 = arith.constant 0 : i32
    return %c0_i32, %c0_i32_0 : i32, i32
  }
  func.func @transform_2(%arg0: i32) -> (i32, i32) {
    %c0_i32 = arith.constant 0 : i32
    %c0_i32_0 = arith.constant 0 : i32
    %c0_i32_1 = arith.constant 0 : i32
    return %c0_i32, %c0_i32_0 : i32, i32
  }
  func.func @transform_3(%arg0: i32) -> (i32, i32) {
    %c0_i32 = arith.constant 0 : i32
    %c0_i32_0 = arith.constant 0 : i32
    %c0_i32_1 = arith.constant 0 : i32
    return %c0_i32, %c0_i32_0 : i32, i32
  }
  func.func @transform_4(%arg0: i32) -> (i32, i32) {
    %c0_i32 = arith.constant 0 : i32
    %c0_i32_0 = arith.constant 0 : i32
    return %arg0, %c0_i32 : i32, i32
  }
  func.func @transform_5(%arg0: i32) -> (i32, i32) {
    %c0_i32 = arith.constant 0 : i32
    %c0_i32_0 = arith.constant 0 : i32
    return %arg0, %c0_i32 : i32, i32
  }
  func.func @transform_6(%arg0: i32) -> (i32, i32) {
    %c0_i32 = arith.constant 0 : i32
    %c0_i32_0 = arith.constant 0 : i32
    return %arg0, %c0_i32 : i32, i32
  }
}

module attributes {stable_mosaic.version = 11 : i64} {
  func.func @kernel(%arg0: i32, %arg1: memref<16x32xf32, #tpu.memory_space<vmem>>, %arg2: memref<32x32xf32, #tpu.memory_space<vmem>>, %arg3: memref<32x32xf32, #tpu.memory_space<vmem>>, %arg4: memref<32x32xf32, #tpu.memory_space<vmem>>, %arg5: memref<16x32xf32, #tpu.memory_space<vmem>>, %arg6: memref<16x32xf32, #tpu.memory_space<vmem>>, %arg7: memref<16x32xf32, #tpu.memory_space<vmem>>) attributes {dimension_semantics = [#tpu.dimension_semantics<parallel>], iteration_bounds = array<i64: 1>, scalar_prefetch = 0 : i64, scratch_operands = 0 : i64, tpu.core_type = #tpu.core_type<tc>, window_params = [{transform_indices = @transform_0, window_bounds = array<i64: 16, 32>}, {pipeline_mode = #tpu.pipeline_mode<synchronous>, transform_indices = @transform_1, window_bounds = array<i64: 32, 32>}, {pipeline_mode = #tpu.pipeline_mode<synchronous>, transform_indices = @transform_2, window_bounds = array<i64: 32, 32>}, {pipeline_mode = #tpu.pipeline_mode<synchronous>, transform_indices = @transform_3, window_bounds = array<i64: 32, 32>}, {transform_indices = @transform_4, window_bounds = array<i64: 16, 32>}, {transform_indices = @transform_5, window_bounds = array<i64: 16, 32>}, {transform_indices = @transform_6, window_bounds = array<i64: 16, 32>}]} {
    %c0 = arith.constant 0 : index
    %c0_0 = arith.constant 0 : index
    %0 = vector.load %arg1[%c0, %c0_0] : memref<16x32xf32, #tpu.memory_space<vmem>>, vector<16x32xf32>
    %c0_1 = arith.constant 0 : index
    %c0_2 = arith.constant 0 : index
    %1 = vector.load %arg2[%c0_1, %c0_2] : memref<32x32xf32, #tpu.memory_space<vmem>>, vector<32x32xf32>
    %cst = arith.constant dense<0.000000e+00> : vector<16x32xf32>
    %2 = tpu.matmul %0, %1, %cst {dimension_numbers = #tpu.dot_dimension_numbers<[1], [0], [0], [1], [0, 0, 1, 1], [], []>} : vector<16x32xf32>, vector<32x32xf32>, vector<16x32xf32> -> vector<16x32xf32>
    %cst_3 = arith.constant 0.353553385 : f32
    %3 = vector.broadcast %cst_3 : f32 to vector<16x32xf32>
    %4 = arith.mulf %2, %3 : vector<16x32xf32>
    %c0_4 = arith.constant 0 : index
    %c0_5 = arith.constant 0 : index
    %5 = vector.load %arg5[%c0_4, %c0_5] : memref<16x32xf32, #tpu.memory_space<vmem>>, vector<16x32xf32>
    tpu.vector_store %arg5[%c0_4, %c0_5], %4 {strides = array<i32>} : memref<16x32xf32, #tpu.memory_space<vmem>>, vector<16x32xf32>,
    %c0_6 = arith.constant 0 : index
    %c0_7 = arith.constant 0 : index
    %6 = vector.load %arg3[%c0_6, %c0_7] : memref<32x32xf32, #tpu.memory_space<vmem>>, vector<32x32xf32>
    %cst_8 = arith.constant dense<0.000000e+00> : vector<16x32xf32>
    %7 = tpu.matmul %0, %6, %cst_8 {dimension_numbers = #tpu.dot_dimension_numbers<[1], [0], [0], [1], [0, 0, 1, 1], [], []>} : vector<16x32xf32>, vector<32x32xf32>, vector<16x32xf32> -> vector<16x32xf32>
    %c0_9 = arith.constant 0 : index
    %c0_10 = arith.constant 0 : index
    %8 = vector.load %arg6[%c0_9, %c0_10] : memref<16x32xf32, #tpu.memory_space<vmem>>, vector<16x32xf32>
    tpu.vector_store %arg6[%c0_9, %c0_10], %7 {strides = array<i32>} : memref<16x32xf32, #tpu.memory_space<vmem>>, vector<16x32xf32>,
    %c0_11 = arith.constant 0 : index
    %c0_12 = arith.constant 0 : index
    %9 = vector.load %arg4[%c0_11, %c0_12] : memref<32x32xf32, #tpu.memory_space<vmem>>, vector<32x32xf32>
    %cst_13 = arith.constant dense<0.000000e+00> : vector<16x32xf32>
    %10 = tpu.matmul %0, %9, %cst_13 {dimension_numbers = #tpu.dot_dimension_numbers<[1], [0], [0], [1], [0, 0, 1, 1], [], []>} : vector<16x32xf32>, vector<32x32xf32>, vector<16x32xf32> -> vector<16x32xf32>
    %c0_14 = arith.constant 0 : index
    %c0_15 = arith.constant 0 : index
    %11 = vector.load %arg7[%c0_14, %c0_15] : memref<16x32xf32, #tpu.memory_space<vmem>>, vector<16x32xf32>
    tpu.vector_store %arg7[%c0_14, %c0_15], %10 {strides = array<i32>} : memref<16x32xf32, #tpu.memory_space<vmem>>, vector<16x32xf32>,
    return
  }
  func.func @transform_0(%arg0: i32) -> (i32, i32) {
    %c0_i32 = arith.constant 0 : i32
    %c0_i32_0 = arith.constant 0 : i32
    return %arg0, %c0_i32 : i32, i32
  }
  func.func @transform_1(%arg0: i32) -> (i32, i32) {
    %c0_i32 = arith.constant 0 : i32
    %c0_i32_0 = arith.constant 0 : i32
    %c0_i32_1 = arith.constant 0 : i32
    return %c0_i32, %c0_i32_0 : i32, i32
  }
  func.func @transform_2(%arg0: i32) -> (i32, i32) {
    %c0_i32 = arith.constant 0 : i32
    %c0_i32_0 = arith.constant 0 : i32
    %c0_i32_1 = arith.constant 0 : i32
    return %c0_i32, %c0_i32_0 : i32, i32
  }
  func.func @transform_3(%arg0: i32) -> (i32, i32) {
    %c0_i32 = arith.constant 0 : i32
    %c0_i32_0 = arith.constant 0 : i32
    %c0_i32_1 = arith.constant 0 : i32
    return %c0_i32, %c0_i32_0 : i32, i32
  }
  func.func @transform_4(%arg0: i32) -> (i32, i32) {
    %c0_i32 = arith.constant 0 : i32
    %c0_i32_0 = arith.constant 0 : i32
    return %arg0, %c0_i32 : i32, i32
  }
  func.func @transform_5(%arg0: i32) -> (i32, i32) {
    %c0_i32 = arith.constant 0 : i32
    %c0_i32_0 = arith.constant 0 : i32
    return %arg0, %c0_i32 : i32, i32
  }
  func.func @transform_6(%arg0: i32) -> (i32, i32) {
    %c0_i32 = arith.constant 0 : i32
    %c0_i32_0 = arith.constant 0 : i32
    return %arg0, %c0_i32 : i32, i32
  }
}

</mosaic_0001>

<llo_original>
// kernel: tpu_custom_call.1
$region0: #{tpu_custom_call.1}
  #allocation0 [shape = 'u32[]', space=smem, size = 0x4, offset = 0x4, fixed_abs, tag = 'smem constant byte address 0x4 - core index']
  #allocation1 [shape = 'u32[144,128]{1,0:T(1,128)}', space=vmem, size = 0x12000, scoped, tag = 'internal scratch']
  %s0 = inlined_call_operand.hbm [shape: f32[16,32], index: 0, kind: input, shape index: {}]
  %s1 = inlined_call_operand.hbm [shape: f32[32,32], index: 1, kind: input, shape index: {}]
  %s2 = inlined_call_operand.hbm [shape: f32[32,32], index: 2, kind: input, shape index: {}]
  %s3 = inlined_call_operand.hbm [shape: f32[32,32], index: 3, kind: input, shape index: {}]
  %s4 = inlined_call_operand.hbm [shape: f32[16,32], index: 4, kind: output, shape index: {0}]
  %s5 = inlined_call_operand.hbm [shape: f32[16,32], index: 5, kind: output, shape index: {1}]
  %s6 = inlined_call_operand.hbm [shape: f32[16,32], index: 6, kind: output, shape index: {2}]
  %7 = xla_tuple %s4, %s5, %s6
  %s8 = sld [smem:[#allocation0]]
  $region58: #{tpu_custom_call.1} parent=0
    _
  %s10 = ssub.s32 1, %s8
  %s11 = scalar_select 0, %s10, %s8
  $region1: #{tpu_custom_call.1} parent=0
    #allocation2 [shape = 'u8[8192]{0}', space=vmem, size = 0x2000, scoped, tag = 'input window, operand 0, single buffered']
    #allocation3 [shape = 's32[1]{0}', space=sflag, size = 0x4, scoped, tag = 'scoped memory for tpu_custom_call.1']
    #allocation4 [shape = 's32[1]{0}', space=sflag, size = 0x4, scoped, tag = 'scoped memory for tpu_custom_call.1']
    #allocation5 [shape = 'u8[16384]{0}', space=vmem, size = 0x4000, scoped, tag = 'input window, operand 1, single buffered']
    #allocation6 [shape = 's32[1]{0}', space=sflag, size = 0x4, scoped, tag = 'scoped memory for tpu_custom_call.1']
    #allocation7 [shape = 'u8[16384]{0}', space=vmem, size = 0x4000, scoped, tag = 'input window, operand 2, single buffered']
    #allocation8 [shape = 'u8[16384]{0}', space=vmem, size = 0x4000, scoped, tag = 'input window, operand 3, single buffered']
    #allocation9 [shape = 's32[1]{0}', space=sflag, size = 0x4, scoped, tag = 'scoped memory for tpu_custom_call.1']
    #allocation10 [shape = 'u8[8192]{0}', space=vmem, size = 0x2000, scoped, tag = 'output window, operand 0, single buffered']
    #allocation11 [shape = 'u8[8192]{0}', space=vmem, size = 0x2000, scoped, tag = 'output window, operand 1, single buffered']
    #allocation12 [shape = 's32[1]{0}', space=sflag, size = 0x4, scoped, tag = 'scoped memory for tpu_custom_call.1']
    #allocation13 [shape = 'u8[8192]{0}', space=vmem, size = 0x2000, scoped, tag = 'output window, operand 2, single buffered']
    %12 = vsyncpa [#allocation3], 0
    %13 = vsyncpa [#allocation6], 0
    %14 = vsyncpa [#allocation9], 0
    %15 = vsyncpa [#allocation4], 0
    %16 = vsyncpa [#allocation12], 0
    // Predicated region
    $region2: #{tpu_custom_call.1} parent=1 // pred_check
      _
    $region3: #{tpu_custom_call.1} parent=1 // pred_check_branch
      %18 = sbr.rel (0) target = $region5
    $region4: #{tpu_custom_call.1} parent=1 // pred_region
      %s20 = ssub.s32 256, 256
      %21 = vsyncadd [#allocation3], %s20
      %s22 = sshll.u32 [#allocation2], 4
      %s23 = int_to_ptr.vmem [resolvable:$true] %s22
      %28 = dma.hbm_to_vmem [thread:$0]  %s0, 256, %s23, [#allocation3], 128, 128, 8
    $region5: #{tpu_custom_call.1} parent=1 // pred_fallthru
      _
    // Predicated region
    $region6: #{tpu_custom_call.1} parent=1 // pred_check
      _
    $region7: #{tpu_custom_call.1} parent=1 // pred_check_branch
      %30 = sbr.rel (0) target = $region9
    $region8: #{tpu_custom_call.1} parent=1 // pred_region
      %s32 = ssub.s32 512, 512
      %33 = vsyncadd [#allocation6], %s32
      %s34 = sshll.u32 [#allocation5], 4
      %s35 = int_to_ptr.vmem [resolvable:$true] %s34
      %40 = dma.hbm_to_vmem [thread:$0]  %s1, 512, %s35, [#allocation6], 128, 128, 8
    $region9: #{tpu_custom_call.1} parent=1 // pred_fallthru
      _
    // Predicated region
    $region10: #{tpu_custom_call.1} parent=1 // pred_check
      _
    $region11: #{tpu_custom_call.1} parent=1 // pred_check_branch
      %42 = sbr.rel (0) target = $region13
    $region12: #{tpu_custom_call.1} parent=1 // pred_region
      %s44 = ssub.s32 512, 512
      %45 = vsyncadd [#allocation6], %s44
      %s46 = sshll.u32 [#allocation7], 4
      %s47 = int_to_ptr.vmem [resolvable:$true] %s46
      %52 = dma.hbm_to_vmem [thread:$0]  %s2, 512, %s47, [#allocation6], 128, 128, 8
    $region13: #{tpu_custom_call.1} parent=1 // pred_fallthru
      _
    // Predicated region
    $region14: #{tpu_custom_call.1} parent=1 // pred_check
      _
    $region15: #{tpu_custom_call.1} parent=1 // pred_check_branch
      %54 = sbr.rel (0) target = $region17
    $region16: #{tpu_custom_call.1} parent=1 // pred_region
      %s56 = ssub.s32 512, 512
      %57 = vsyncadd [#allocation9], %s56
      %s58 = sshll.u32 [#allocation8], 4
      %s59 = int_to_ptr.vmem [resolvable:$true] %s58
      %64 = dma.hbm_to_vmem [thread:$0]  %s3, 512, %s59, [#allocation9], 128, 128, 8
    $region17: #{tpu_custom_call.1} parent=1 // pred_fallthru
      _
    // Predicated region
    $region18: #{tpu_custom_call.1} parent=1 // pred_check
      _
    $region19: #{tpu_custom_call.1} parent=1 // pred_check_branch
      %66 = sbr.rel (0) target = $region21
    $region20: #{tpu_custom_call.1} parent=1 // pred_region
      %67 = dma.done [#allocation3], 256
    $region21: #{tpu_custom_call.1} parent=1 // pred_fallthru
      _
    // Predicated region
    $region22: #{tpu_custom_call.1} parent=1 // pred_check
      _
    $region23: #{tpu_custom_call.1} parent=1 // pred_check_branch
      %69 = sbr.rel (0) target = $region25
    $region24: #{tpu_custom_call.1} parent=1 // pred_region
      %70 = dma.done [#allocation6], 512
    $region25: #{tpu_custom_call.1} parent=1 // pred_fallthru
      _
    // Predicated region
    $region26: #{tpu_custom_call.1} parent=1 // pred_check
      _
    $region27: #{tpu_custom_call.1} parent=1 // pred_check_branch
      %72 = sbr.rel (0) target = $region29
    $region28: #{tpu_custom_call.1} parent=1 // pred_region
      %73 = dma.done [#allocation6], 512
    $region29: #{tpu_custom_call.1} parent=1 // pred_fallthru
      _
    // Predicated region
    $region30: #{tpu_custom_call.1} parent=1 // pred_check
      _
    $region31: #{tpu_custom_call.1} parent=1 // pred_check_branch
      %75 = sbr.rel (0) target = $region33
    $region32: #{tpu_custom_call.1} parent=1 // pred_region
      %76 = dma.done [#allocation9], 512
    $region33: #{tpu_custom_call.1} parent=1 // pred_fallthru
      _
    %v77 = vld [vmem:[#allocation2] sm:$0xff]
    %v78 = vld [vmem:[#allocation2 + $0x8] sm:$0xff]
    %v79 = vld [vmem:[#allocation5] sm:$0xff]
    %v80 = vld [vmem:[#allocation5 + $0x8] sm:$0xff]
    %v81 = vld [vmem:[#allocation5 + $0x10] sm:$0xff]
    %v82 = vld [vmem:[#allocation5 + $0x18] sm:$0xff]
    %vm83 = vcmask 261120
    %v85 = vsel %vm83, %v77, 0
    %v88 = vsel %vm83, %v78, 0
    %90 = vmatprep.subr.mxu0 0.0
    %91 = vmatpush1.msra.mxu0 %v79
    %92 = vmatprep.subr.mxu0 0.0
    %93 = vmatpush1.msra.mxu0 %v80
    %94 = vmatprep.subr.mxu0 0.0
    %95 = vmatpush1.msra.mxu0 %v81
    %96 = vmatprep.subr.mxu0 0.0
    %97 = vmatpush1.msra.mxu0 %v82
    %98 = vmatprep.subr.mxu0 0.0
    %99 = vmatpush1.msra.mxu0 0.0
    %100 = vmatprep.subr.mxu0 0.0
    %101 = vmatpush1.msra.mxu0 0.0
    %102 = vmatprep.subr.mxu0 0.0
    %103 = vmatpush1.msra.mxu0 0.0
    %104 = vmatprep.subr.mxu0 0.0
    %105 = vmatpush1.msra.mxu0 0.0
    %106 = vmatprep.subr.mxu0 0.0
    %107 = vmatpush1.msra.mxu0 0.0
    %108 = vmatprep.subr.mxu0 0.0
    %109 = vmatpush1.msra.mxu0 0.0
    %110 = vmatprep.subr.mxu0 0.0
    %111 = vmatpush1.msra.mxu0 0.0
    %112 = vmatprep.subr.mxu0 0.0
    %113 = vmatpush1.msra.mxu0 0.0
    %114 = vmatprep.subr.mxu0 0.0
    %115 = vmatpush1.msra.mxu0 0.0
    %116 = vmatprep.subr.mxu0 0.0
    %117 = vmatpush1.msra.mxu0 0.0
    %118 = vmatprep.subr.mxu0 0.0
    %119 = vmatpush1.msra.mxu0 0.0
    %120 = vmatprep.subr.mxu0 0.0
    %121 = vmatpush1.msra.mxu0 0.0
    %122 = vmatprep.subr.mxu0 0.0
    %123 = vmatpush1.msra.mxu0 0.0
    %124 = vmatprep.subr.mxu0 0.0
    %125 = vmatpush1.msra.mxu0 0.0
    %126 = vmatprep.subr.mxu0 0.0
    %127 = vmatpush1.msra.mxu0 0.0
    %128 = vmatprep.subr.mxu0 0.0
    %129 = vmatpush1.msra.mxu0 0.0
    %130 = vmatprep.subr.mxu0 0.0
    %131 = vmatpush1.msra.mxu0 0.0
    %132 = vmatprep.subr.mxu0 0.0
    %133 = vmatpush1.msra.mxu0 0.0
    %134 = vmatprep.subr.mxu0 0.0
    %135 = vmatpush1.msra.mxu0 0.0
    %136 = vmatprep.subr.mxu0 0.0
    %137 = vmatpush1.msra.mxu0 0.0
    %138 = vmatprep.subr.mxu0 0.0
    %139 = vmatpush1.msra.mxu0 0.0
    %140 = vmatprep.subr.mxu0 0.0
    %141 = vmatpush1.msra.mxu0 0.0
    %142 = vmatprep.subr.mxu0 0.0
    %143 = vmatpush1.msra.mxu0 0.0
    %144 = vmatprep.subr.mxu0 0.0
    %145 = vmatpush1.msra.mxu0 0.0
    %146 = vmatprep.subr.mxu0 0.0
    %147 = vmatpush1.msra.mxu0 0.0
    %148 = vmatprep.subr.mxu0 0.0
    %149 = vmatpush1.msra.mxu0 0.0
    %150 = vmatprep.subr.mxu0 0.0
    %151 = vmatpush1.msra.mxu0 0.0
    %152 = vmatprep.subr.mxu0 0.0
    %153 = vmatpush1.msra.mxu0 0.0
    %154 = vmatprep.mubr.f32.mxu0 0.0
    %155 = vmatmul.mubr.f32.gmra.mrb[0].mxu0 %v85
    %v156 = vpop.f32.mrb[0].mxu0
    %v157 = vadd.f32 0.0, %v156
    %v158 = vpop.f32.mrb[0].mxu0
    %159 = vmatprep.mubr.f32.mxu0 0.0
    %160 = vmatmul.mubr.f32.gmra.mrb[0].mxu0 %v88
    %v161 = vpop.f32.mrb[0].mxu0
    %v162 = vadd.f32 0.0, %v161
    %v163 = vpop.f32.mrb[0].mxu0
    %164 = vdwg.mxu0
    %v165 = vmul.f32 %v157, 0.35355338
    %v166 = vmul.f32 %v162, 0.35355338
    %167 = vst.msk [vmem:[#allocation10] sm:$0xff] %vm83, %v165
    %168 = vst.msk [vmem:[#allocation10 + $0x8] sm:$0xff] %vm83, %v166
    %v169 = vld [vmem:[#allocation7] sm:$0xff]
    %v170 = vld [vmem:[#allocation7 + $0x8] sm:$0xff]
    %v171 = vld [vmem:[#allocation7 + $0x10] sm:$0xff]
    %v172 = vld [vmem:[#allocation7 + $0x18] sm:$0xff]
    %173 = vmatprep.subr.mxu0 0.0
    %174 = vmatpush1.msra.mxu0 %v169
    %175 = vmatprep.subr.mxu0 0.0
    %176 = vmatpush1.msra.mxu0 %v170
    %177 = vmatprep.subr.mxu0 0.0
    %178 = vmatpush1.msra.mxu0 %v171
    %179 = vmatprep.subr.mxu0 0.0
    %180 = vmatpush1.msra.mxu0 %v172
    %181 = vmatprep.subr.mxu0 0.0
    %182 = vmatpush1.msra.mxu0 0.0
    %183 = vmatprep.subr.mxu0 0.0
    %184 = vmatpush1.msra.mxu0 0.0
    %185 = vmatprep.subr.mxu0 0.0
    %186 = vmatpush1.msra.mxu0 0.0
    %187 = vmatprep.subr.mxu0 0.0
    %188 = vmatpush1.msra.mxu0 0.0
    %189 = vmatprep.subr.mxu0 0.0
    %190 = vmatpush1.msra.mxu0 0.0
    %191 = vmatprep.subr.mxu0 0.0
    %192 = vmatpush1.msra.mxu0 0.0
    %193 = vmatprep.subr.mxu0 0.0
    %194 = vmatpush1.msra.mxu0 0.0
    %195 = vmatprep.subr.mxu0 0.0
    %196 = vmatpush1.msra.mxu0 0.0
    %197 = vmatprep.subr.mxu0 0.0
    %198 = vmatpush1.msra.mxu0 0.0
    %199 = vmatprep.subr.mxu0 0.0
    %200 = vmatpush1.msra.mxu0 0.0
    %201 = vmatprep.subr.mxu0 0.0
    %202 = vmatpush1.msra.mxu0 0.0
    %203 = vmatprep.subr.mxu0 0.0
    %204 = vmatpush1.msra.mxu0 0.0
    %205 = vmatprep.subr.mxu0 0.0
    %206 = vmatpush1.msra.mxu0 0.0
    %207 = vmatprep.subr.mxu0 0.0
    %208 = vmatpush1.msra.mxu0 0.0
    %209 = vmatprep.subr.mxu0 0.0
    %210 = vmatpush1.msra.mxu0 0.0
    %211 = vmatprep.subr.mxu0 0.0
    %212 = vmatpush1.msra.mxu0 0.0
    %213 = vmatprep.subr.mxu0 0.0
    %214 = vmatpush1.msra.mxu0 0.0
    %215 = vmatprep.subr.mxu0 0.0
    %216 = vmatpush1.msra.mxu0 0.0
    %217 = vmatprep.subr.mxu0 0.0
    %218 = vmatpush1.msra.mxu0 0.0
    %219 = vmatprep.subr.mxu0 0.0
    %220 = vmatpush1.msra.mxu0 0.0
    %221 = vmatprep.subr.mxu0 0.0
    %222 = vmatpush1.msra.mxu0 0.0
    %223 = vmatprep.subr.mxu0 0.0
    %224 = vmatpush1.msra.mxu0 0.0
    %225 = vmatprep.subr.mxu0 0.0
    %226 = vmatpush1.msra.mxu0 0.0
    %227 = vmatprep.subr.mxu0 0.0
    %228 = vmatpush1.msra.mxu0 0.0
    %229 = vmatprep.subr.mxu0 0.0
    %230 = vmatpush1.msra.mxu0 0.0
    %231 = vmatprep.subr.mxu0 0.0
    %232 = vmatpush1.msra.mxu0 0.0
    %233 = vmatprep.subr.mxu0 0.0
    %234 = vmatpush1.msra.mxu0 0.0
    %235 = vmatprep.subr.mxu0 0.0
    %236 = vmatpush1.msra.mxu0 0.0
    %237 = vmatprep.mubr.f32.mxu0 0.0
    %238 = vmatmul.mubr.f32.gmra.mrb[0].mxu0 %v85
    %v239 = vpop.f32.mrb[0].mxu0
    %v240 = vadd.f32 0.0, %v239
    %v241 = vpop.f32.mrb[0].mxu0
    %242 = vmatprep.mubr.f32.mxu0 0.0
    %243 = vmatmul.mubr.f32.gmra.mrb[0].mxu0 %v88
    %v244 = vpop.f32.mrb[0].mxu0
    %v245 = vadd.f32 0.0, %v244
    %v246 = vpop.f32.mrb[0].mxu0
    %247 = vdwg.mxu0
    %248 = vst.msk [vmem:[#allocation11] sm:$0xff] %vm83, %v240
    %249 = vst.msk [vmem:[#allocation11 + $0x8] sm:$0xff] %vm83, %v245
    %v250 = vld [vmem:[#allocation8] sm:$0xff]
    %v251 = vld [vmem:[#allocation8 + $0x8] sm:$0xff]
    %v252 = vld [vmem:[#allocation8 + $0x10] sm:$0xff]
    %v253 = vld [vmem:[#allocation8 + $0x18] sm:$0xff]
    %254 = vmatprep.subr.mxu0 0.0
    %255 = vmatpush1.msra.mxu0 %v250
    %256 = vmatprep.subr.mxu0 0.0
    %257 = vmatpush1.msra.mxu0 %v251
    %258 = vmatprep.subr.mxu0 0.0
    %259 = vmatpush1.msra.mxu0 %v252
    %260 = vmatprep.subr.mxu0 0.0
    %261 = vmatpush1.msra.mxu0 %v253
    %262 = vmatprep.subr.mxu0 0.0
    %263 = vmatpush1.msra.mxu0 0.0
    %264 = vmatprep.subr.mxu0 0.0
    %265 = vmatpush1.msra.mxu0 0.0
    %266 = vmatprep.subr.mxu0 0.0
    %267 = vmatpush1.msra.mxu0 0.0
    %268 = vmatprep.subr.mxu0 0.0
    %269 = vmatpush1.msra.mxu0 0.0
    %270 = vmatprep.subr.mxu0 0.0
    %271 = vmatpush1.msra.mxu0 0.0
    %272 = vmatprep.subr.mxu0 0.0
    %273 = vmatpush1.msra.mxu0 0.0
    %274 = vmatprep.subr.mxu0 0.0
    %275 = vmatpush1.msra.mxu0 0.0
    %276 = vmatprep.subr.mxu0 0.0
    %277 = vmatpush1.msra.mxu0 0.0
    %278 = vmatprep.subr.mxu0 0.0
    %279 = vmatpush1.msra.mxu0 0.0
    %280 = vmatprep.subr.mxu0 0.0
    %281 = vmatpush1.msra.mxu0 0.0
    %282 = vmatprep.subr.mxu0 0.0
    %283 = vmatpush1.msra.mxu0 0.0
    %284 = vmatprep.subr.mxu0 0.0
    %285 = vmatpush1.msra.mxu0 0.0
    %286 = vmatprep.subr.mxu0 0.0
    %287 = vmatpush1.msra.mxu0 0.0
    %288 = vmatprep.subr.mxu0 0.0
    %289 = vmatpush1.msra.mxu0 0.0
    %290 = vmatprep.subr.mxu0 0.0
    %291 = vmatpush1.msra.mxu0 0.0
    %292 = vmatprep.subr.mxu0 0.0
    %293 = vmatpush1.msra.mxu0 0.0
    %294 = vmatprep.subr.mxu0 0.0
    %295 = vmatpush1.msra.mxu0 0.0
    %296 = vmatprep.subr.mxu0 0.0
    %297 = vmatpush1.msra.mxu0 0.0
    %298 = vmatprep.subr.mxu0 0.0
    %299 = vmatpush1.msra.mxu0 0.0
    %300 = vmatprep.subr.mxu0 0.0
    %301 = vmatpush1.msra.mxu0 0.0
    %302 = vmatprep.subr.mxu0 0.0
    %303 = vmatpush1.msra.mxu0 0.0
    %304 = vmatprep.subr.mxu0 0.0
    %305 = vmatpush1.msra.mxu0 0.0
    %306 = vmatprep.subr.mxu0 0.0
    %307 = vmatpush1.msra.mxu0 0.0
    %308 = vmatprep.subr.mxu0 0.0
    %309 = vmatpush1.msra.mxu0 0.0
    %310 = vmatprep.subr.mxu0 0.0
    %311 = vmatpush1.msra.mxu0 0.0
    %312 = vmatprep.subr.mxu0 0.0
    %313 = vmatpush1.msra.mxu0 0.0
    %314 = vmatprep.subr.mxu0 0.0
    %315 = vmatpush1.msra.mxu0 0.0
    %316 = vmatprep.subr.mxu0 0.0
    %317 = vmatpush1.msra.mxu0 0.0
    %318 = vmatprep.mubr.f32.mxu0 0.0
    %319 = vmatmul.mubr.f32.gmra.mrb[0].mxu0 %v85
    %v320 = vpop.f32.mrb[0].mxu0
    %v321 = vadd.f32 0.0, %v320
    %v322 = vpop.f32.mrb[0].mxu0
    %323 = vmatprep.mubr.f32.mxu0 0.0
    %324 = vmatmul.mubr.f32.gmra.mrb[0].mxu0 %v88
    %v325 = vpop.f32.mrb[0].mxu0
    %v326 = vadd.f32 0.0, %v325
    %v327 = vpop.f32.mrb[0].mxu0
    %328 = vdwg.mxu0
    %329 = vst.msk [vmem:[#allocation13] sm:$0xff] %vm83, %v321
    %330 = vst.msk [vmem:[#allocation13 + $0x8] sm:$0xff] %vm83, %v326
    // Predicated region
    $region34: #{tpu_custom_call.1} parent=1 // pred_check
      _
    $region35: #{tpu_custom_call.1} parent=1 // pred_check_branch
      %332 = sbr.rel (0) target = $region37
    $region36: #{tpu_custom_call.1} parent=1 // pred_region
      %s334 = ssub.s32 256, 256
      %335 = vsyncadd [#allocation4], %s334
      %s336 = sshll.u32 [#allocation10], 4
      %s337 = int_to_ptr.vmem [resolvable:$true] %s336
      %342 = dma.vmem_to_hbm [thread:$0]  %s337, 256, %s4, [#allocation4], 128, 128, 8
    $region37: #{tpu_custom_call.1} parent=1 // pred_fallthru
      _
    // Predicated region
    $region38: #{tpu_custom_call.1} parent=1 // pred_check
      _
    $region39: #{tpu_custom_call.1} parent=1 // pred_check_branch
      %344 = sbr.rel (0) target = $region41
    $region40: #{tpu_custom_call.1} parent=1 // pred_region
      %s346 = ssub.s32 256, 256
      %347 = vsyncadd [#allocation12], %s346
      %s348 = sshll.u32 [#allocation11], 4
      %s349 = int_to_ptr.vmem [resolvable:$true] %s348
      %354 = dma.vmem_to_hbm [thread:$0]  %s349, 256, %s5, [#allocation12], 128, 128, 8
    $region41: #{tpu_custom_call.1} parent=1 // pred_fallthru
      _
    // Predicated region
    $region42: #{tpu_custom_call.1} parent=1 // pred_check
      _
    $region43: #{tpu_custom_call.1} parent=1 // pred_check_branch
      %356 = sbr.rel (0) target = $region45
    $region44: #{tpu_custom_call.1} parent=1 // pred_region
      %s358 = ssub.s32 256, 256
      %359 = vsyncadd [#allocation12], %s358
      %s360 = sshll.u32 [#allocation13], 4
      %s361 = int_to_ptr.vmem [resolvable:$true] %s360
      %366 = dma.vmem_to_hbm [thread:$0]  %s361, 256, %s6, [#allocation12], 128, 128, 8
    $region45: #{tpu_custom_call.1} parent=1 // pred_fallthru
      _
    // Predicated region
    $region46: #{tpu_custom_call.1} parent=1 // pred_check
      _
    $region47: #{tpu_custom_call.1} parent=1 // pred_check_branch
      %368 = sbr.rel (0) target = $region49
    $region48: #{tpu_custom_call.1} parent=1 // pred_region
      %369 = dma.done [#allocation4], 256
    $region49: #{tpu_custom_call.1} parent=1 // pred_fallthru
      _
    // Predicated region
    $region50: #{tpu_custom_call.1} parent=1 // pred_check
      _
    $region51: #{tpu_custom_call.1} parent=1 // pred_check_branch
      %371 = sbr.rel (0) target = $region53
    $region52: #{tpu_custom_call.1} parent=1 // pred_region
      %372 = dma.done [#allocation12], 256
    $region53: #{tpu_custom_call.1} parent=1 // pred_fallthru
      _
    // Predicated region
    $region54: #{tpu_custom_call.1} parent=1 // pred_check
      _
    $region55: #{tpu_custom_call.1} parent=1 // pred_check_branch
      %374 = sbr.rel (0) target = $region57
    $region56: #{tpu_custom_call.1} parent=1 // pred_region
      %375 = dma.done [#allocation12], 256
    $region57: #{tpu_custom_call.1} parent=1 // pred_fallthru
      _
    %376 = vsyncpa [#allocation3], 1
    %377 = vsyncpa [#allocation6], 1
    %378 = vsyncpa [#allocation9], 1
    %379 = vsyncpa [#allocation4], 1
    %380 = vsyncpa [#allocation12], 1

// kernel: tpu_custom_call.1
$region0: #{tpu_custom_call.1}
  #allocation0 [shape = 'u32[]', space=smem, size = 0x4, offset = 0x4, fixed_abs, tag = 'smem constant byte address 0x4 - core index']
  #allocation1 [shape = 'u32[144,128]{1,0:T(1,128)}', space=vmem, size = 0x12000, scoped, tag = 'internal scratch']
  %s0 = inlined_call_operand.hbm [shape: f32[16,32], index: 0, kind: input, shape index: {}]
  %s1 = inlined_call_operand.hbm [shape: f32[32,32], index: 1, kind: input, shape index: {}]
  %s2 = inlined_call_operand.hbm [shape: f32[32,32], index: 2, kind: input, shape index: {}]
  %s3 = inlined_call_operand.hbm [shape: f32[32,32], index: 3, kind: input, shape index: {}]
  %s4 = inlined_call_operand.hbm [shape: f32[16,32], index: 4, kind: output, shape index: {0}]
  %s5 = inlined_call_operand.hbm [shape: f32[16,32], index: 5, kind: output, shape index: {1}]
  %s6 = inlined_call_operand.hbm [shape: f32[16,32], index: 6, kind: output, shape index: {2}]
  %7 = xla_tuple %s4, %s5, %s6
  %s8 = sld [smem:[#allocation0]]
  $region58: #{tpu_custom_call.1} parent=0
    _
  %s10 = ssub.s32 1, %s8
  %s11 = scalar_select 0, %s10, %s8
  $region1: #{tpu_custom_call.1} parent=0
    #allocation2 [shape = 'u8[8192]{0}', space=vmem, size = 0x2000, scoped, tag = 'input window, operand 0, single buffered']
    #allocation3 [shape = 's32[1]{0}', space=sflag, size = 0x4, scoped, tag = 'scoped memory for tpu_custom_call.1']
    #allocation4 [shape = 's32[1]{0}', space=sflag, size = 0x4, scoped, tag = 'scoped memory for tpu_custom_call.1']
    #allocation5 [shape = 'u8[16384]{0}', space=vmem, size = 0x4000, scoped, tag = 'input window, operand 1, single buffered']
    #allocation6 [shape = 's32[1]{0}', space=sflag, size = 0x4, scoped, tag = 'scoped memory for tpu_custom_call.1']
    #allocation7 [shape = 'u8[16384]{0}', space=vmem, size = 0x4000, scoped, tag = 'input window, operand 2, single buffered']
    #allocation8 [shape = 'u8[16384]{0}', space=vmem, size = 0x4000, scoped, tag = 'input window, operand 3, single buffered']
    #allocation9 [shape = 's32[1]{0}', space=sflag, size = 0x4, scoped, tag = 'scoped memory for tpu_custom_call.1']
    #allocation10 [shape = 'u8[8192]{0}', space=vmem, size = 0x2000, scoped, tag = 'output window, operand 0, single buffered']
    #allocation11 [shape = 'u8[8192]{0}', space=vmem, size = 0x2000, scoped, tag = 'output window, operand 1, single buffered']
    #allocation12 [shape = 's32[1]{0}', space=sflag, size = 0x4, scoped, tag = 'scoped memory for tpu_custom_call.1']
    #allocation13 [shape = 'u8[8192]{0}', space=vmem, size = 0x2000, scoped, tag = 'output window, operand 2, single buffered']
    %12 = vsyncpa [#allocation3], 0
    %13 = vsyncpa [#allocation6], 0
    %14 = vsyncpa [#allocation9], 0
    %15 = vsyncpa [#allocation4], 0
    %16 = vsyncpa [#allocation12], 0
    // Predicated region
    $region2: #{tpu_custom_call.1} parent=1 // pred_check
      _
    $region3: #{tpu_custom_call.1} parent=1 // pred_check_branch
      %18 = sbr.rel (0) target = $region5
    $region4: #{tpu_custom_call.1} parent=1 // pred_region
      %s20 = ssub.s32 256, 256
      %21 = vsyncadd [#allocation3], %s20
      %s22 = sshll.u32 [#allocation2], 4
      %s23 = int_to_ptr.vmem [resolvable:$true] %s22
      %28 = dma.hbm_to_vmem [thread:$0]  %s0, 256, %s23, [#allocation3], 128, 128, 8
    $region5: #{tpu_custom_call.1} parent=1 // pred_fallthru
      _
    // Predicated region
    $region6: #{tpu_custom_call.1} parent=1 // pred_check
      _
    $region7: #{tpu_custom_call.1} parent=1 // pred_check_branch
      %30 = sbr.rel (0) target = $region9
    $region8: #{tpu_custom_call.1} parent=1 // pred_region
      %s32 = ssub.s32 512, 512
      %33 = vsyncadd [#allocation6], %s32
      %s34 = sshll.u32 [#allocation5], 4
      %s35 = int_to_ptr.vmem [resolvable:$true] %s34
      %40 = dma.hbm_to_vmem [thread:$0]  %s1, 512, %s35, [#allocation6], 128, 128, 8
    $region9: #{tpu_custom_call.1} parent=1 // pred_fallthru
      _
    // Predicated region
    $region10: #{tpu_custom_call.1} parent=1 // pred_check
      _
    $region11: #{tpu_custom_call.1} parent=1 // pred_check_branch
      %42 = sbr.rel (0) target = $region13
    $region12: #{tpu_custom_call.1} parent=1 // pred_region
      %s44 = ssub.s32 512, 512
      %45 = vsyncadd [#allocation6], %s44
      %s46 = sshll.u32 [#allocation7], 4
      %s47 = int_to_ptr.vmem [resolvable:$true] %s46
      %52 = dma.hbm_to_vmem [thread:$0]  %s2, 512, %s47, [#allocation6], 128, 128, 8
    $region13: #{tpu_custom_call.1} parent=1 // pred_fallthru
      _
    // Predicated region
    $region14: #{tpu_custom_call.1} parent=1 // pred_check
      _
    $region15: #{tpu_custom_call.1} parent=1 // pred_check_branch
      %54 = sbr.rel (0) target = $region17
    $region16: #{tpu_custom_call.1} parent=1 // pred_region
      %s56 = ssub.s32 512, 512
      %57 = vsyncadd [#allocation9], %s56
      %s58 = sshll.u32 [#allocation8], 4
      %s59 = int_to_ptr.vmem [resolvable:$true] %s58
      %64 = dma.hbm_to_vmem [thread:$0]  %s3, 512, %s59, [#allocation9], 128, 128, 8
    $region17: #{tpu_custom_call.1} parent=1 // pred_fallthru
      _
    // Predicated region
    $region18: #{tpu_custom_call.1} parent=1 // pred_check
      _
    $region19: #{tpu_custom_call.1} parent=1 // pred_check_branch
      %66 = sbr.rel (0) target = $region21
    $region20: #{tpu_custom_call.1} parent=1 // pred_region
      %67 = dma.done [#allocation3], 256
    $region21: #{tpu_custom_call.1} parent=1 // pred_fallthru
      _
    // Predicated region
    $region22: #{tpu_custom_call.1} parent=1 // pred_check
      _
    $region23: #{tpu_custom_call.1} parent=1 // pred_check_branch
      %69 = sbr.rel (0) target = $region25
    $region24: #{tpu_custom_call.1} parent=1 // pred_region
      %70 = dma.done [#allocation6], 512
    $region25: #{tpu_custom_call.1} parent=1 // pred_fallthru
      _
    // Predicated region
    $region26: #{tpu_custom_call.1} parent=1 // pred_check
      _
    $region27: #{tpu_custom_call.1} parent=1 // pred_check_branch
      %72 = sbr.rel (0) target = $region29
    $region28: #{tpu_custom_call.1} parent=1 // pred_region
      %73 = dma.done [#allocation6], 512
    $region29: #{tpu_custom_call.1} parent=1 // pred_fallthru
      _
    // Predicated region
    $region30: #{tpu_custom_call.1} parent=1 // pred_check
      _
    $region31: #{tpu_custom_call.1} parent=1 // pred_check_branch
      %75 = sbr.rel (0) target = $region33
    $region32: #{tpu_custom_call.1} parent=1 // pred_region
      %76 = dma.done [#allocation9], 512
    $region33: #{tpu_custom_call.1} parent=1 // pred_fallthru
      _
    %v77 = vld [vmem:[#allocation2] sm:$0xff]
    %v78 = vld [vmem:[#allocation2 + $0x8] sm:$0xff]
    %v79 = vld [vmem:[#allocation5] sm:$0xff]
    %v80 = vld [vmem:[#allocation5 + $0x8] sm:$0xff]
    %v81 = vld [vmem:[#allocation5 + $0x10] sm:$0xff]
    %v82 = vld [vmem:[#allocation5 + $0x18] sm:$0xff]
    %vm83 = vcmask 261120
    %v85 = vsel %vm83, %v77, 0
    %v88 = vsel %vm83, %v78, 0
    %90 = vmatprep.subr.mxu0 0.0
    %91 = vmatpush1.msra.mxu0 %v79
    %92 = vmatprep.subr.mxu0 0.0
    %93 = vmatpush1.msra.mxu0 %v80
    %94 = vmatprep.subr.mxu0 0.0
    %95 = vmatpush1.msra.mxu0 %v81
    %96 = vmatprep.subr.mxu0 0.0
    %97 = vmatpush1.msra.mxu0 %v82
    %98 = vmatprep.subr.mxu0 0.0
    %99 = vmatpush1.msra.mxu0 0.0
    %100 = vmatprep.subr.mxu0 0.0
    %101 = vmatpush1.msra.mxu0 0.0
    %102 = vmatprep.subr.mxu0 0.0
    %103 = vmatpush1.msra.mxu0 0.0
    %104 = vmatprep.subr.mxu0 0.0
    %105 = vmatpush1.msra.mxu0 0.0
    %106 = vmatprep.subr.mxu0 0.0
    %107 = vmatpush1.msra.mxu0 0.0
    %108 = vmatprep.subr.mxu0 0.0
    %109 = vmatpush1.msra.mxu0 0.0
    %110 = vmatprep.subr.mxu0 0.0
    %111 = vmatpush1.msra.mxu0 0.0
    %112 = vmatprep.subr.mxu0 0.0
    %113 = vmatpush1.msra.mxu0 0.0
    %114 = vmatprep.subr.mxu0 0.0
    %115 = vmatpush1.msra.mxu0 0.0
    %116 = vmatprep.subr.mxu0 0.0
    %117 = vmatpush1.msra.mxu0 0.0
    %118 = vmatprep.subr.mxu0 0.0
    %119 = vmatpush1.msra.mxu0 0.0
    %120 = vmatprep.subr.mxu0 0.0
    %121 = vmatpush1.msra.mxu0 0.0
    %122 = vmatprep.subr.mxu0 0.0
    %123 = vmatpush1.msra.mxu0 0.0
    %124 = vmatprep.subr.mxu0 0.0
    %125 = vmatpush1.msra.mxu0 0.0
    %126 = vmatprep.subr.mxu0 0.0
    %127 = vmatpush1.msra.mxu0 0.0
    %128 = vmatprep.subr.mxu0 0.0
    %129 = vmatpush1.msra.mxu0 0.0
    %130 = vmatprep.subr.mxu0 0.0
    %131 = vmatpush1.msra.mxu0 0.0
    %132 = vmatprep.subr.mxu0 0.0
    %133 = vmatpush1.msra.mxu0 0.0
    %134 = vmatprep.subr.mxu0 0.0
    %135 = vmatpush1.msra.mxu0 0.0
    %136 = vmatprep.subr.mxu0 0.0
    %137 = vmatpush1.msra.mxu0 0.0
    %138 = vmatprep.subr.mxu0 0.0
    %139 = vmatpush1.msra.mxu0 0.0
    %140 = vmatprep.subr.mxu0 0.0
    %141 = vmatpush1.msra.mxu0 0.0
    %142 = vmatprep.subr.mxu0 0.0
    %143 = vmatpush1.msra.mxu0 0.0
    %144 = vmatprep.subr.mxu0 0.0
    %145 = vmatpush1.msra.mxu0 0.0
    %146 = vmatprep.subr.mxu0 0.0
    %147 = vmatpush1.msra.mxu0 0.0
    %148 = vmatprep.subr.mxu0 0.0
    %149 = vmatpush1.msra.mxu0 0.0
    %150 = vmatprep.subr.mxu0 0.0
    %151 = vmatpush1.msra.mxu0 0.0
    %152 = vmatprep.subr.mxu0 0.0
    %153 = vmatpush1.msra.mxu0 0.0
    %154 = vmatprep.mubr.f32.mxu0 0.0
    %155 = vmatmul.mubr.f32.gmra.mrb[0].mxu0 %v85
    %v156 = vpop.f32.mrb[0].mxu0
    %v157 = vadd.f32 0.0, %v156
    %v158 = vpop.f32.mrb[0].mxu0
    %159 = vmatprep.mubr.f32.mxu0 0.0
    %160 = vmatmul.mubr.f32.gmra.mrb[0].mxu0 %v88
    %v161 = vpop.f32.mrb[0].mxu0
    %v162 = vadd.f32 0.0, %v161
    %v163 = vpop.f32.mrb[0].mxu0
    %164 = vdwg.mxu0
    %v165 = vmul.f32 %v157, 0.35355338
    %v166 = vmul.f32 %v162, 0.35355338
    %167 = vst.msk [vmem:[#allocation10] sm:$0xff] %vm83, %v165
    %168 = vst.msk [vmem:[#allocation10 + $0x8] sm:$0xff] %vm83, %v166
    %v169 = vld [vmem:[#allocation7] sm:$0xff]
    %v170 = vld [vmem:[#allocation7 + $0x8] sm:$0xff]
    %v171 = vld [vmem:[#allocation7 + $0x10] sm:$0xff]
    %v172 = vld [vmem:[#allocation7 + $0x18] sm:$0xff]
    %173 = vmatprep.subr.mxu0 0.0
    %174 = vmatpush1.msra.mxu0 %v169
    %175 = vmatprep.subr.mxu0 0.0
    %176 = vmatpush1.msra.mxu0 %v170
    %177 = vmatprep.subr.mxu0 0.0
    %178 = vmatpush1.msra.mxu0 %v171
    %179 = vmatprep.subr.mxu0 0.0
    %180 = vmatpush1.msra.mxu0 %v172
    %181 = vmatprep.subr.mxu0 0.0
    %182 = vmatpush1.msra.mxu0 0.0
    %183 = vmatprep.subr.mxu0 0.0
    %184 = vmatpush1.msra.mxu0 0.0
    %185 = vmatprep.subr.mxu0 0.0
    %186 = vmatpush1.msra.mxu0 0.0
    %187 = vmatprep.subr.mxu0 0.0
    %188 = vmatpush1.msra.mxu0 0.0
    %189 = vmatprep.subr.mxu0 0.0
    %190 = vmatpush1.msra.mxu0 0.0
    %191 = vmatprep.subr.mxu0 0.0
    %192 = vmatpush1.msra.mxu0 0.0
    %193 = vmatprep.subr.mxu0 0.0
    %194 = vmatpush1.msra.mxu0 0.0
    %195 = vmatprep.subr.mxu0 0.0
    %196 = vmatpush1.msra.mxu0 0.0
    %197 = vmatprep.subr.mxu0 0.0
    %198 = vmatpush1.msra.mxu0 0.0
    %199 = vmatprep.subr.mxu0 0.0
    %200 = vmatpush1.msra.mxu0 0.0
    %201 = vmatprep.subr.mxu0 0.0
    %202 = vmatpush1.msra.mxu0 0.0
    %203 = vmatprep.subr.mxu0 0.0
    %204 = vmatpush1.msra.mxu0 0.0
    %205 = vmatprep.subr.mxu0 0.0
    %206 = vmatpush1.msra.mxu0 0.0
    %207 = vmatprep.subr.mxu0 0.0
    %208 = vmatpush1.msra.mxu0 0.0
    %209 = vmatprep.subr.mxu0 0.0
    %210 = vmatpush1.msra.mxu0 0.0
    %211 = vmatprep.subr.mxu0 0.0
    %212 = vmatpush1.msra.mxu0 0.0
    %213 = vmatprep.subr.mxu0 0.0
    %214 = vmatpush1.msra.mxu0 0.0
    %215 = vmatprep.subr.mxu0 0.0
    %216 = vmatpush1.msra.mxu0 0.0
    %217 = vmatprep.subr.mxu0 0.0
    %218 = vmatpush1.msra.mxu0 0.0
    %219 = vmatprep.subr.mxu0 0.0
    %220 = vmatpush1.msra.mxu0 0.0
    %221 = vmatprep.subr.mxu0 0.0
    %222 = vmatpush1.msra.mxu0 0.0
    %223 = vmatprep.subr.mxu0 0.0
    %224 = vmatpush1.msra.mxu0 0.0
    %225 = vmatprep.subr.mxu0 0.0
    %226 = vmatpush1.msra.mxu0 0.0
    %227 = vmatprep.subr.mxu0 0.0
    %228 = vmatpush1.msra.mxu0 0.0
    %229 = vmatprep.subr.mxu0 0.0
    %230 = vmatpush1.msra.mxu0 0.0
    %231 = vmatprep.subr.mxu0 0.0
    %232 = vmatpush1.msra.mxu0 0.0
    %233 = vmatprep.subr.mxu0 0.0
    %234 = vmatpush1.msra.mxu0 0.0
    %235 = vmatprep.subr.mxu0 0.0
    %236 = vmatpush1.msra.mxu0 0.0
    %237 = vmatprep.mubr.f32.mxu0 0.0
    %238 = vmatmul.mubr.f32.gmra.mrb[0].mxu0 %v85
    %v239 = vpop.f32.mrb[0].mxu0
    %v240 = vadd.f32 0.0, %v239
    %v241 = vpop.f32.mrb[0].mxu0
    %242 = vmatprep.mubr.f32.mxu0 0.0
    %243 = vmatmul.mubr.f32.gmra.mrb[0].mxu0 %v88
    %v244 = vpop.f32.mrb[0].mxu0
    %v245 = vadd.f32 0.0, %v244
    %v246 = vpop.f32.mrb[0].mxu0
    %247 = vdwg.mxu0
    %248 = vst.msk [vmem:[#allocation11] sm:$0xff] %vm83, %v240
    %249 = vst.msk [vmem:[#allocation11 + $0x8] sm:$0xff] %vm83, %v245
    %v250 = vld [vmem:[#allocation8] sm:$0xff]
    %v251 = vld [vmem:[#allocation8 + $0x8] sm:$0xff]
    %v252 = vld [vmem:[#allocation8 + $0x10] sm:$0xff]
    %v253 = vld [vmem:[#allocation8 + $0x18] sm:$0xff]
    %254 = vmatprep.subr.mxu0 0.0
    %255 = vmatpush1.msra.mxu0 %v250
    %256 = vmatprep.subr.mxu0 0.0
    %257 = vmatpush1.msra.mxu0 %v251
    %258 = vmatprep.subr.mxu0 0.0
    %259 = vmatpush1.msra.mxu0 %v252
    %260 = vmatprep.subr.mxu0 0.0
    %261 = vmatpush1.msra.mxu0 %v253
    %262 = vmatprep.subr.mxu0 0.0
    %263 = vmatpush1.msra.mxu0 0.0
    %264 = vmatprep.subr.mxu0 0.0
    %265 = vmatpush1.msra.mxu0 0.0
    %266 = vmatprep.subr.mxu0 0.0
    %267 = vmatpush1.msra.mxu0 0.0
    %268 = vmatprep.subr.mxu0 0.0
    %269 = vmatpush1.msra.mxu0 0.0
    %270 = vmatprep.subr.mxu0 0.0
    %271 = vmatpush1.msra.mxu0 0.0
    %272 = vmatprep.subr.mxu0 0.0
    %273 = vmatpush1.msra.mxu0 0.0
    %274 = vmatprep.subr.mxu0 0.0
    %275 = vmatpush1.msra.mxu0 0.0
    %276 = vmatprep.subr.mxu0 0.0
    %277 = vmatpush1.msra.mxu0 0.0
    %278 = vmatprep.subr.mxu0 0.0
    %279 = vmatpush1.msra.mxu0 0.0
    %280 = vmatprep.subr.mxu0 0.0
    %281 = vmatpush1.msra.mxu0 0.0
    %282 = vmatprep.subr.mxu0 0.0
    %283 = vmatpush1.msra.mxu0 0.0
    %284 = vmatprep.subr.mxu0 0.0
    %285 = vmatpush1.msra.mxu0 0.0
    %286 = vmatprep.subr.mxu0 0.0
    %287 = vmatpush1.msra.mxu0 0.0
    %288 = vmatprep.subr.mxu0 0.0
    %289 = vmatpush1.msra.mxu0 0.0
    %290 = vmatprep.subr.mxu0 0.0
    %291 = vmatpush1.msra.mxu0 0.0
    %292 = vmatprep.subr.mxu0 0.0
    %293 = vmatpush1.msra.mxu0 0.0
    %294 = vmatprep.subr.mxu0 0.0
    %295 = vmatpush1.msra.mxu0 0.0
    %296 = vmatprep.subr.mxu0 0.0
    %297 = vmatpush1.msra.mxu0 0.0
    %298 = vmatprep.subr.mxu0 0.0
    %299 = vmatpush1.msra.mxu0 0.0
    %300 = vmatprep.subr.mxu0 0.0
    %301 = vmatpush1.msra.mxu0 0.0
    %302 = vmatprep.subr.mxu0 0.0
    %303 = vmatpush1.msra.mxu0 0.0
    %304 = vmatprep.subr.mxu0 0.0
    %305 = vmatpush1.msra.mxu0 0.0
    %306 = vmatprep.subr.mxu0 0.0
    %307 = vmatpush1.msra.mxu0 0.0
    %308 = vmatprep.subr.mxu0 0.0
    %309 = vmatpush1.msra.mxu0 0.0
    %310 = vmatprep.subr.mxu0 0.0
    %311 = vmatpush1.msra.mxu0 0.0
    %312 = vmatprep.subr.mxu0 0.0
    %313 = vmatpush1.msra.mxu0 0.0
    %314 = vmatprep.subr.mxu0 0.0
    %315 = vmatpush1.msra.mxu0 0.0
    %316 = vmatprep.subr.mxu0 0.0
    %317 = vmatpush1.msra.mxu0 0.0
    %318 = vmatprep.mubr.f32.mxu0 0.0
    %319 = vmatmul.mubr.f32.gmra.mrb[0].mxu0 %v85
    %v320 = vpop.f32.mrb[0].mxu0
    %v321 = vadd.f32 0.0, %v320
    %v322 = vpop.f32.mrb[0].mxu0
    %323 = vmatprep.mubr.f32.mxu0 0.0
    %324 = vmatmul.mubr.f32.gmra.mrb[0].mxu0 %v88
    %v325 = vpop.f32.mrb[0].mxu0
    %v326 = vadd.f32 0.0, %v325
    %v327 = vpop.f32.mrb[0].mxu0
    %328 = vdwg.mxu0
    %329 = vst.msk [vmem:[#allocation13] sm:$0xff] %vm83, %v321
    %330 = vst.msk [vmem:[#allocation13 + $0x8] sm:$0xff] %vm83, %v326
    // Predicated region
    $region34: #{tpu_custom_call.1} parent=1 // pred_check
      _
    $region35: #{tpu_custom_call.1} parent=1 // pred_check_branch
      %332 = sbr.rel (0) target = $region37
    $region36: #{tpu_custom_call.1} parent=1 // pred_region
      %s334 = ssub.s32 256, 256
      %335 = vsyncadd [#allocation4], %s334
      %s336 = sshll.u32 [#allocation10], 4
      %s337 = int_to_ptr.vmem [resolvable:$true] %s336
      %342 = dma.vmem_to_hbm [thread:$0]  %s337, 256, %s4, [#allocation4], 128, 128, 8
    $region37: #{tpu_custom_call.1} parent=1 // pred_fallthru
      _
    // Predicated region
    $region38: #{tpu_custom_call.1} parent=1 // pred_check
      _
    $region39: #{tpu_custom_call.1} parent=1 // pred_check_branch
      %344 = sbr.rel (0) target = $region41
    $region40: #{tpu_custom_call.1} parent=1 // pred_region
      %s346 = ssub.s32 256, 256
      %347 = vsyncadd [#allocation12], %s346
      %s348 = sshll.u32 [#allocation11], 4
      %s349 = int_to_ptr.vmem [resolvable:$true] %s348
      %354 = dma.vmem_to_hbm [thread:$0]  %s349, 256, %s5, [#allocation12], 128, 128, 8
    $region41: #{tpu_custom_call.1} parent=1 // pred_fallthru
      _
    // Predicated region
    $region42: #{tpu_custom_call.1} parent=1 // pred_check
      _
    $region43: #{tpu_custom_call.1} parent=1 // pred_check_branch
      %356 = sbr.rel (0) target = $region45
    $region44: #{tpu_custom_call.1} parent=1 // pred_region
      %s358 = ssub.s32 256, 256
      %359 = vsyncadd [#allocation12], %s358
      %s360 = sshll.u32 [#allocation13], 4
      %s361 = int_to_ptr.vmem [resolvable:$true] %s360
      %366 = dma.vmem_to_hbm [thread:$0]  %s361, 256, %s6, [#allocation12], 128, 128, 8
    $region45: #{tpu_custom_call.1} parent=1 // pred_fallthru
      _
    // Predicated region
    $region46: #{tpu_custom_call.1} parent=1 // pred_check
      _
    $region47: #{tpu_custom_call.1} parent=1 // pred_check_branch
      %368 = sbr.rel (0) target = $region49
    $region48: #{tpu_custom_call.1} parent=1 // pred_region
      %369 = dma.done [#allocation4], 256
    $region49: #{tpu_custom_call.1} parent=1 // pred_fallthru
      _
    // Predicated region
    $region50: #{tpu_custom_call.1} parent=1 // pred_check
      _
    $region51: #{tpu_custom_call.1} parent=1 // pred_check_branch
      %371 = sbr.rel (0) target = $region53
    $region52: #{tpu_custom_call.1} parent=1 // pred_region
      %372 = dma.done [#allocation12], 256
    $region53: #{tpu_custom_call.1} parent=1 // pred_fallthru
      _
    // Predicated region
    $region54: #{tpu_custom_call.1} parent=1 // pred_check
      _
    $region55: #{tpu_custom_call.1} parent=1 // pred_check_branch
      %374 = sbr.rel (0) target = $region57
    $region56: #{tpu_custom_call.1} parent=1 // pred_region
      %375 = dma.done [#allocation12], 256
    $region57: #{tpu_custom_call.1} parent=1 // pred_fallthru
      _
    %376 = vsyncpa [#allocation3], 1
    %377 = vsyncpa [#allocation6], 1
    %378 = vsyncpa [#allocation9], 1
    %379 = vsyncpa [#allocation4], 1
    %380 = vsyncpa [#allocation12], 1

</llo_original>
